<compile_context>
chip_gen: v6e
topology: v6e:2x2x1
jax: 0.10.0
libtpu: 0.0.40
codegen_flags: <defaults>
</compile_context>

<pallas_src>
import functools
import math

import jax
import jax.numpy as jnp
from jax.experimental import pallas as pl
from jax.experimental.pallas import tpu as pltpu


# ---------------------------------------------------------------------------
# Pallas kernels
# ---------------------------------------------------------------------------
def _mlp_chain_kernel(x_ref, *refs, n_layers):
    """out = tanh(... tanh(x @ W0 + b0) ... @ W{n-1} + b{n-1}).

    refs = [w0, b0, w1, b1, ..., out_ref]; all operands live in VMEM.
    The Python loop unrolls at trace time (tiny, fixed depth).
    """
    out_ref = refs[-1]
    params = refs[:-1]
    h = x_ref[...]
    for layer in range(n_layers):
        w = params[2 * layer][...]
        b = params[2 * layer + 1][...]
        h = jnp.tanh(jnp.dot(h, w, preferred_element_type=jnp.float32) + b)
    out_ref[...] = h.astype(out_ref.dtype)


def _mlp_chain_split_kernel(x_ref, *refs, n_layers, dim_pi):
    """Same chain as above, but the final activation (columns = [pi | vf]) is
    split in-kernel and written to two outputs (no wrapper-side slab slicing).
    refs = [w0, b0, ..., pi_out_ref, vf_out_ref]."""
    pi_ref, vf_ref = refs[-2], refs[-1]
    params = refs[:-2]
    h = x_ref[...]
    for layer in range(n_layers):
        w = params[2 * layer][...]
        b = params[2 * layer + 1][...]
        h = jnp.tanh(jnp.dot(h, w, preferred_element_type=jnp.float32) + b)
    pi_ref[...] = h[:, :dim_pi].astype(pi_ref.dtype)
    vf_ref[...] = h[:, dim_pi:].astype(vf_ref.dtype)


def _mlp_two_head_kernel(x_ref, *refs, n_shared, n_pi, n_vf):
    """Fallback when the pi/vf head stacks have different depths and cannot be
    concatenated: run the shared trunk once, then each head chain, still inside
    a single pallas_call. refs = shared + pi + vf params + [pi_out, vf_out]."""
    pi_out, vf_out = refs[-2], refs[-1]
    params = refs[:-2]

    def run(start, n, h):
        for layer in range(n):
            w = params[start + 2 * layer][...]
            b = params[start + 2 * layer + 1][...]
            h = jnp.tanh(jnp.dot(h, w, preferred_element_type=jnp.float32) + b)
        return h

    shared = run(0, n_shared, x_ref[...])
    pi_out[...] = run(2 * n_shared, n_pi, shared).astype(pi_out.dtype)
    vf_out[...] = run(2 * (n_shared + n_pi), n_vf, shared).astype(vf_out.dtype)


# ---------------------------------------------------------------------------
# pallas_call wrappers
# ---------------------------------------------------------------------------
_VMEM = pltpu.MemorySpace.VMEM

# Tiling policy (review feedback):
#   * batch <= _GRIDLESS_MAX_BATCH -> gridless, all operands whole-array VMEM
#     resident (lowest latency, no pipeline prologue/epilogue).
#   * larger batches -> 1-D cdiv grid over the batch, tile up to 8192 rows
#     (~6 MB double-buffered f32 I/O, safe under v5e's 16 MiB scoped VMEM),
#     at least 1024 rows (amortizes ~0.35 us/step overhead), and aimed at
#     >= ~4 grid steps so v7x's two TensorCores both get work.
_GRIDLESS_MAX_BATCH = 1024
_MAX_BATCH_BLOCK = 8192
_MIN_BATCH_BLOCK = 1024


def _pick_batch_block(batch):
    target = -(-batch // 4)            # aim for ~4 grid steps
    target = -(-target // 8) * 8       # round up to sublane multiple
    return max(_MIN_BATCH_BLOCK, min(_MAX_BATCH_BLOCK, target))


def _cost_estimate(batch, in_dim, total_out, layer_params, itemsize):
    flops = 0
    trans = 0
    param_bytes = 0
    for (w, b) in layer_params:
        flops += 2 * batch * w.shape[0] * w.shape[1]
        trans += batch * w.shape[1]
        param_bytes += (w.size + b.size) * w.dtype.itemsize
    bytes_accessed = batch * (in_dim + total_out) * itemsize + param_bytes
    return pl.CostEstimate(flops=flops, transcendentals=trans,
                           bytes_accessed=bytes_accessed)


def _call_chain(features, layer_params, out_dims):
    """Single fused kernel over a chain of Linear+Tanh layers.

    out_dims: int  -> single (B, out_dims) output.
              (dpi, dvf) tuple -> final activation columns are [pi | vf];
              the kernel splits them and returns two outputs.
    """
    B, Din = features.shape
    split = isinstance(out_dims, tuple)
    total_out = sum(out_dims) if split else out_dims

    inputs = [features]
    for (w, b) in layer_params:
        inputs.append(w)
        inputs.append(b)

    if split:
        kernel = functools.partial(_mlp_chain_split_kernel,
                                   n_layers=len(layer_params),
                                   dim_pi=out_dims[0])
        out_shape = tuple(jax.ShapeDtypeStruct((B, d), features.dtype)
                          for d in out_dims)
    else:
        kernel = functools.partial(_mlp_chain_kernel,
                                   n_layers=len(layer_params))
        out_shape = jax.ShapeDtypeStruct((B, total_out), features.dtype)

    cost = _cost_estimate(B, Din, total_out, layer_params,
                          features.dtype.itemsize)

    if B > _GRIDLESS_MAX_BATCH:
        # Batch-tiled path: cdiv grid (partial last block is masked by Pallas),
        # constant index_map keeps the tiny weights/biases VMEM-resident across
        # grid steps, and the batch axis is "parallel" so a v7x chip splits it
        # across its two TensorCores.
        blk = _pick_batch_block(B)
        grid = (pl.cdiv(B, blk),)
        in_specs = [pl.BlockSpec((blk, Din), lambda i: (i, 0))]
        for (w, b) in layer_params:
            in_specs.append(pl.BlockSpec(w.shape, lambda i: (0, 0)))
            in_specs.append(pl.BlockSpec(b.shape, lambda i: (0, 0)))
        if split:
            out_specs = tuple(pl.BlockSpec((blk, d), lambda i: (i, 0))
                              for d in out_dims)
        else:
            out_specs = pl.BlockSpec((blk, total_out), lambda i: (i, 0))
        return pl.pallas_call(
            kernel,
            out_shape=out_shape,
            grid=grid,
            in_specs=in_specs,
            out_specs=out_specs,
            compiler_params=pltpu.CompilerParams(
                dimension_semantics=("parallel",)),
            cost_estimate=cost,
        )(*inputs)

    # Small batch: no grid, whole arrays resident in VMEM (no pipelining,
    # no double-buffering, single invocation).
    in_specs = [pl.BlockSpec(memory_space=_VMEM) for _ in inputs]
    if split:
        out_specs = tuple(pl.BlockSpec(memory_space=_VMEM) for _ in out_dims)
    else:
        out_specs = pl.BlockSpec(memory_space=_VMEM)
    return pl.pallas_call(
        kernel,
        out_shape=out_shape,
        in_specs=in_specs,
        out_specs=out_specs,
        cost_estimate=cost,
    )(*inputs)


def _call_two_heads(features, shared_p, pi_p, vf_p, dim_pi, dim_vf):
    """Fallback single-kernel forward when the heads cannot be concatenated."""
    # TODO(synk): add a batch-tiled grid variant here if this fallback is ever
    # used with rollout-sized batches (the concrete net_arch takes the fused path).
    B = features.shape[0]
    inputs = [features]
    for (w, b) in list(shared_p) + list(pi_p) + list(vf_p):
        inputs.append(w)
        inputs.append(b)
    return pl.pallas_call(
        functools.partial(_mlp_two_head_kernel, n_shared=len(shared_p),
                          n_pi=len(pi_p), n_vf=len(vf_p)),
        out_shape=(jax.ShapeDtypeStruct((B, dim_pi), features.dtype),
                   jax.ShapeDtypeStruct((B, dim_vf), features.dtype)),
        in_specs=[pl.BlockSpec(memory_space=_VMEM) for _ in inputs],
        out_specs=(pl.BlockSpec(memory_space=_VMEM),
                   pl.BlockSpec(memory_space=_VMEM)),
    )(*inputs)


# ---------------------------------------------------------------------------
# jit-able forward implementations (params are pytree args, plan is static)
# ---------------------------------------------------------------------------
def _fused_forward(layer_params, features, *, dim_pi, dim_vf, has_heads):
    if has_heads:
        return _call_chain(features, layer_params, (dim_pi, dim_vf))
    out = _call_chain(features, layer_params, dim_pi)  # all layers shared
    return out, out


def _split_forward(params, features, *, dim_pi, dim_vf):
    shared_p, pi_p, vf_p = params
    return _call_two_heads(features, shared_p, pi_p, vf_p, dim_pi, dim_vf)


def _chain_forward(layer_params, features, *, out_dim):
    return _call_chain(features, layer_params, out_dim)


# ---------------------------------------------------------------------------
# Parameter construction (deterministic, PyTorch-nn.Linear-style init)
# ---------------------------------------------------------------------------
def _init_linear(key, in_dim, out_dim, dtype=jnp.float32):
    kw, kb = jax.random.split(key)
    bound = 1.0 / math.sqrt(in_dim)
    # Stored as (in_dim, out_dim) == W.T in PyTorch convention; bias as (1, out).
    w = jax.random.uniform(kw, (in_dim, out_dim), dtype, -bound, bound)
    b = jax.random.uniform(kb, (1, out_dim), dtype, -bound, bound)
    return w, b


def _block_diag(wa, wb):
    za = jnp.zeros((wa.shape[0], wb.shape[1]), wa.dtype)
    zb = jnp.zeros((wb.shape[0], wa.shape[1]), wb.dtype)
    return jnp.concatenate(
        [jnp.concatenate([wa, za], axis=1),
         jnp.concatenate([zb, wb], axis=1)], axis=0)


class MlpExtractorPallas:
    """JAX/Pallas re-implementation of stable-baselines3 MlpExtractor.forward."""

    def __init__(self, feature_dim, net_arch, key):
        shared_dims, policy_only, value_only = [], [], []
        last = feature_dim
        for layer in net_arch:
            if isinstance(layer, int):
                shared_dims.append((last, layer))
                last = layer
            else:
                assert isinstance(layer, dict)
                policy_only = list(layer.get("pi", []))
                value_only = list(layer.get("vf", []))
                break

        self.latent_dim_pi = policy_only[-1] if policy_only else last
        self.latent_dim_vf = value_only[-1] if value_only else last

        n_params = len(shared_dims) + len(policy_only) + len(value_only)
        keys = jax.random.split(key, max(n_params, 1))
        ki = 0

        self.shared_params = []
        for (din, dout) in shared_dims:
            self.shared_params.append(_init_linear(keys[ki], din, dout)); ki += 1

        self.policy_params = []
        dpi = last
        for dout in policy_only:
            self.policy_params.append(_init_linear(keys[ki], dpi, dout)); ki += 1
            dpi = dout

        self.value_params = []
        dvf = last
        for dout in value_only:
            self.value_params.append(_init_linear(keys[ki], dvf, dout)); ki += 1
            dvf = dout

        # ---- fused parameter chains -----------------------------------------
        # Heads of equal depth are merged level-by-level into one matmul:
        # level 0 shares its input (the shared latent) so plain column concat is
        # exact; deeper levels use a block-diagonal weight so the pi and vf
        # columns never mix. The kernel splits the final [pi | vf] columns into
        # two outputs (no wrapper-side slicing).
        self._heads_fused = len(policy_only) == len(value_only)
        if self._heads_fused:
            fused_heads = []
            for lvl, ((wp, bp), (wv, bv)) in enumerate(
                    zip(self.policy_params, self.value_params)):
                w = (jnp.concatenate([wp, wv], axis=1) if lvl == 0
                     else _block_diag(wp, wv))
                b = jnp.concatenate([bp, bv], axis=1)
                fused_heads.append((w, b))
            self._chain_both = tuple(self.shared_params) + tuple(fused_heads)
        else:
            self._chain_both = None
        self._chain_pi = tuple(self.shared_params) + tuple(self.policy_params)
        self._chain_vf = tuple(self.shared_params) + tuple(self.value_params)

        # ---- jitted entry points ---------------------------------------------
        if self._heads_fused:
            self._fwd_both = jax.jit(functools.partial(
                _fused_forward, dim_pi=self.latent_dim_pi,
                dim_vf=self.latent_dim_vf, has_heads=len(policy_only) > 0))
        else:
            self._fwd_both = jax.jit(functools.partial(
                _split_forward, dim_pi=self.latent_dim_pi,
                dim_vf=self.latent_dim_vf))
        self._fwd_pi = jax.jit(functools.partial(
            _chain_forward, out_dim=self.latent_dim_pi))
        self._fwd_vf = jax.jit(functools.partial(
            _chain_forward, out_dim=self.latent_dim_vf))

    # -- public API mirroring the PyTorch module -------------------------------
    def forward(self, features):
        if self._heads_fused:
            return self._fwd_both(self._chain_both, features)
        return self._fwd_both(
            (tuple(self.shared_params), tuple(self.policy_params),
             tuple(self.value_params)), features)

    def forward_actor(self, features):
        return self._fwd_pi(self._chain_pi, features)

    def forward_critic(self, features):
        return self._fwd_vf(self._chain_vf, features)


# ---------------------------------------------------------------------------
# Pure-JAX reference for correctness checks.
# ---------------------------------------------------------------------------
def _ref_net(params, x):
    for (w, b) in params:
        x = jnp.tanh(x @ w + b)
    return x


if __name__ == "__main__":
    feature_dim = 32
    net_arch = [64, dict(pi=[32], vf=[32])]

    key = jax.random.PRNGKey(0)
    k_params, k_x, k_xl = jax.random.split(key, 3)

    model = MlpExtractorPallas(feature_dim, net_arch, k_params)

    # --- small batch: gridless fused kernel (all operands VMEM-resident) ------
    batch = 4
    features = jax.random.normal(k_x, (batch, feature_dim), dtype=jnp.float32)

    latent_pi, latent_vf = model.forward(features)
    latent_pi = jax.block_until_ready(latent_pi)
    latent_vf = jax.block_until_ready(latent_vf)

    shared_ref = _ref_net(model.shared_params, features)
    pi_ref = _ref_net(model.policy_params, shared_ref)
    vf_ref = _ref_net(model.value_params, shared_ref)

    assert latent_pi.shape == (batch, model.latent_dim_pi)
    assert latent_vf.shape == (batch, model.latent_dim_vf)
    assert jnp.allclose(latent_pi, pi_ref, atol=1e-5, rtol=1e-5)
    assert jnp.allclose(latent_vf, vf_ref, atol=1e-5, rtol=1e-5)

    # actor / critic paths (single fused chain each; shared trunk run once)
    act = jax.block_until_ready(model.forward_actor(features))
    crt = jax.block_until_ready(model.forward_critic(features))
    assert jnp.allclose(act, pi_ref, atol=1e-5, rtol=1e-5)
    assert jnp.allclose(crt, vf_ref, atol=1e-5, rtol=1e-5)

    # --- larger, non-multiple batch: exercises the cdiv-tiled grid path with a
    # masked partial last block and the parallel batch axis ---------------------
    big_batch = 2500
    features_big = jax.random.normal(k_xl, (big_batch, feature_dim),
                                     dtype=jnp.float32)
    pi_big, vf_big = model.forward(features_big)
    pi_big = jax.block_until_ready(pi_big)
    vf_big = jax.block_until_ready(vf_big)

    shared_big = _ref_net(model.shared_params, features_big)
    assert pi_big.shape == (big_batch, model.latent_dim_pi)
    assert vf_big.shape == (big_batch, model.latent_dim_vf)
    assert jnp.allclose(pi_big, _ref_net(model.policy_params, shared_big),
                        atol=1e-5, rtol=1e-5)
    assert jnp.allclose(vf_big, _ref_net(model.value_params, shared_big),
                        atol=1e-5, rtol=1e-5)

    print("KERNEL_OK")
</pallas_src>

<mosaic_0001>
module attributes {stable_mosaic.version = 11 : i64} {
  func.func @_mlp_chain_split_kernel(%arg0: memref<4x32xf32, #tpu.memory_space<vmem>>, %arg1: memref<32x64xf32, #tpu.memory_space<vmem>>, %arg2: memref<1x64xf32, #tpu.memory_space<vmem>>, %arg3: memref<64x64xf32, #tpu.memory_space<vmem>>, %arg4: memref<1x64xf32, #tpu.memory_space<vmem>>, %arg5: memref<4x32xf32, #tpu.memory_space<vmem>>, %arg6: memref<4x32xf32, #tpu.memory_space<vmem>>) attributes {dimension_semantics = [], scalar_prefetch = 0 : i64, scratch_operands = 0 : i64, tpu.core_type = #tpu.core_type<tc>} {
    %c0 = arith.constant 0 : index
    %c0_0 = arith.constant 0 : index
    %0 = vector.load %arg0[%c0, %c0_0] : memref<4x32xf32, #tpu.memory_space<vmem>>, vector<4x32xf32>
    %c0_1 = arith.constant 0 : index
    %c0_2 = arith.constant 0 : index
    %1 = vector.load %arg1[%c0_1, %c0_2] : memref<32x64xf32, #tpu.memory_space<vmem>>, vector<32x64xf32>
    %c0_3 = arith.constant 0 : index
    %c0_4 = arith.constant 0 : index
    %2 = vector.load %arg2[%c0_3, %c0_4] : memref<1x64xf32, #tpu.memory_space<vmem>>, vector<1x64xf32>
    %cst = arith.constant dense<0.000000e+00> : vector<4x64xf32>
    %3 = tpu.matmul %0, %1, %cst {dimension_numbers = #tpu.dot_dimension_numbers<[1], [0], [0], [1], [0, 0, 1, 1], [], []>} : vector<4x32xf32>, vector<32x64xf32>, vector<4x64xf32> -> vector<4x64xf32>
    %4 = vector.broadcast %2 : vector<1x64xf32> to vector<4x64xf32>
    %5 = arith.addf %3, %4 : vector<4x64xf32>
    %6 = math.tanh %5 : vector<4x64xf32>
    %c0_5 = arith.constant 0 : index
    %c0_6 = arith.constant 0 : index
    %7 = vector.load %arg3[%c0_5, %c0_6] : memref<64x64xf32, #tpu.memory_space<vmem>>, vector<64x64xf32>
    %c0_7 = arith.constant 0 : index
    %c0_8 = arith.constant 0 : index
    %8 = vector.load %arg4[%c0_7, %c0_8] : memref<1x64xf32, #tpu.memory_space<vmem>>, vector<1x64xf32>
    %cst_9 = arith.constant dense<0.000000e+00> : vector<4x64xf32>
    %9 = tpu.matmul %6, %7, %cst_9 {dimension_numbers = #tpu.dot_dimension_numbers<[1], [0], [0], [1], [0, 0, 1, 1], [], []>} : vector<4x64xf32>, vector<64x64xf32>, vector<4x64xf32> -> vector<4x64xf32>
    %10 = vector.broadcast %8 : vector<1x64xf32> to vector<4x64xf32>
    %11 = arith.addf %9, %10 : vector<4x64xf32>
    %12 = math.tanh %11 : vector<4x64xf32>
    %13 = vector.extract_strided_slice %12 {offsets = [0, 0], sizes = [4, 32], strides = [1, 1]} : vector<4x64xf32> to vector<4x32xf32>
    %c0_10 = arith.constant 0 : index
    %c0_11 = arith.constant 0 : index
    %14 = vector.load %arg5[%c0_10, %c0_11] : memref<4x32xf32, #tpu.memory_space<vmem>>, vector<4x32xf32>
    tpu.vector_store %arg5[%c0_10, %c0_11], %13 {strides = array<i32>} : memref<4x32xf32, #tpu.memory_space<vmem>>, vector<4x32xf32>,
    %15 = vector.extract_strided_slice %12 {offsets = [0, 32], sizes = [4, 32], strides = [1, 1]} : vector<4x64xf32> to vector<4x32xf32>
    %c0_12 = arith.constant 0 : index
    %c0_13 = arith.constant 0 : index
    %16 = vector.load %arg6[%c0_12, %c0_13] : memref<4x32xf32, #tpu.memory_space<vmem>>, vector<4x32xf32>
    tpu.vector_store %arg6[%c0_12, %c0_13], %15 {strides = array<i32>} : memref<4x32xf32, #tpu.memory_space<vmem>>, vector<4x32xf32>,
    return
  }
}

</mosaic_0001>

<llo_original>
// kernel: _fused_forward.1
$region0: #{_fused_forward.1}
  #allocation0 [shape = 'u32[]', space=smem, size = 0x4, offset = 0x4, fixed_abs, tag = 'smem constant byte address 0x4 - core index']
  #allocation1 [shape = 'u32[144,128]{1,0:T(1,128)}', space=vmem, size = 0x12000, scoped, tag = 'internal scratch']
  %s0 = inlined_call_operand.vmem [shape: f32[4,32], index: 0, kind: input, shape index: {}]
  %s1 = inlined_call_operand.hbm [shape: f32[32,64], index: 1, kind: input, shape index: {}]
  %s2 = inlined_call_operand.vmem [shape: f32[1,64], index: 2, kind: input, shape index: {}]
  %s3 = inlined_call_operand.hbm [shape: f32[64,64], index: 3, kind: input, shape index: {}]
  %s4 = inlined_call_operand.vmem [shape: f32[1,64], index: 4, kind: input, shape index: {}]
  %s5 = inlined_call_operand.hbm [shape: f32[4,32], index: 5, kind: output, shape index: {0}]
  %s6 = inlined_call_operand.hbm [shape: f32[4,32], index: 6, kind: output, shape index: {1}]
  %7 = xla_tuple %s5, %s6
  %s8 = sld [smem:[#allocation0]]
  $region46: #{_fused_forward.1} parent=0
    _
  %s10 = ssub.s32 1, %s8
  %s11 = scalar_select 0, %s10, %s8
  $region1: #{_fused_forward.1} parent=0
    #allocation2 [shape = 'u8[16384]{0}', space=vmem, size = 0x4000, scoped, tag = 'input window, operand 1, single buffered']
    #allocation3 [shape = 's32[1]{0}', space=sflag, size = 0x4, scoped, tag = 'scoped memory for _fused_forward.1']
    #allocation4 [shape = 's32[1]{0}', space=sflag, size = 0x4, scoped, tag = 'scoped memory for _fused_forward.1']
    #allocation5 [shape = 'u8[32768]{0}', space=vmem, size = 0x8000, scoped, tag = 'input window, operand 3, single buffered']
    #allocation6 [shape = 's32[1]{0}', space=sflag, size = 0x4, scoped, tag = 'scoped memory for _fused_forward.1']
    #allocation7 [shape = 'u8[2048]{0}', space=vmem, size = 0x800, scoped, tag = 'output window, operand 0, single buffered']
    #allocation8 [shape = 'u8[2048]{0}', space=vmem, size = 0x800, scoped, tag = 'output window, operand 1, single buffered']
    #allocation9 [shape = 's32[1]{0}', space=sflag, size = 0x4, scoped, tag = 'scoped memory for _fused_forward.1']
    %12 = vsyncpa [#allocation3], 0
    %13 = vsyncpa [#allocation6], 0
    %14 = vsyncpa [#allocation4], 0
    %15 = vsyncpa [#allocation9], 0
    // Predicated region
    $region2: #{_fused_forward.1} parent=1 // pred_check
      _
    $region3: #{_fused_forward.1} parent=1 // pred_check_branch
      %17 = sbr.rel (0) target = $region5
    $region4: #{_fused_forward.1} parent=1 // pred_region
      _
    $region5: #{_fused_forward.1} parent=1 // pred_fallthru
      _
    // Predicated region
    $region6: #{_fused_forward.1} parent=1 // pred_check
      _
    $region7: #{_fused_forward.1} parent=1 // pred_check_branch
      %19 = sbr.rel (0) target = $region9
    $region8: #{_fused_forward.1} parent=1 // pred_region
      %s21 = ssub.s32 512, 512
      %22 = vsyncadd [#allocation3], %s21
      %s23 = sshll.u32 [#allocation2], 4
      %s24 = int_to_ptr.vmem [resolvable:$true] %s23
      %29 = dma.hbm_to_vmem [thread:$0]  %s1, 512, %s24, [#allocation3], 128, 128, 8
    $region9: #{_fused_forward.1} parent=1 // pred_fallthru
      _
    // Predicated region
    $region10: #{_fused_forward.1} parent=1 // pred_check
      _
    $region11: #{_fused_forward.1} parent=1 // pred_check_branch
      %31 = sbr.rel (0) target = $region13
    $region12: #{_fused_forward.1} parent=1 // pred_region
      _
    $region13: #{_fused_forward.1} parent=1 // pred_fallthru
      _
    // Predicated region
    $region14: #{_fused_forward.1} parent=1 // pred_check
      _
    $region15: #{_fused_forward.1} parent=1 // pred_check_branch
      %33 = sbr.rel (0) target = $region17
    $region16: #{_fused_forward.1} parent=1 // pred_region
      %s35 = ssub.s32 1024, 1024
      %36 = vsyncadd [#allocation6], %s35
      %s37 = sshll.u32 [#allocation5], 4
      %s38 = int_to_ptr.vmem [resolvable:$true] %s37
      %43 = dma.hbm_to_vmem [thread:$0]  %s3, 1024, %s38, [#allocation6], 128, 128, 8
    $region17: #{_fused_forward.1} parent=1 // pred_fallthru
      _
    // Predicated region
    $region18: #{_fused_forward.1} parent=1 // pred_check
      _
    $region19: #{_fused_forward.1} parent=1 // pred_check_branch
      %45 = sbr.rel (0) target = $region21
    $region20: #{_fused_forward.1} parent=1 // pred_region
      _
    $region21: #{_fused_forward.1} parent=1 // pred_fallthru
      _
    // Predicated region
    $region22: #{_fused_forward.1} parent=1 // pred_check
      _
    $region23: #{_fused_forward.1} parent=1 // pred_check_branch
      %47 = sbr.rel (0) target = $region25
    $region24: #{_fused_forward.1} parent=1 // pred_region
      %48 = dma.done [#allocation3], 512
    $region25: #{_fused_forward.1} parent=1 // pred_fallthru
      _
    // Predicated region
    $region26: #{_fused_forward.1} parent=1 // pred_check
      _
    $region27: #{_fused_forward.1} parent=1 // pred_check_branch
      %50 = sbr.rel (0) target = $region29
    $region28: #{_fused_forward.1} parent=1 // pred_region
      %51 = dma.done [#allocation6], 1024
    $region29: #{_fused_forward.1} parent=1 // pred_fallthru
      _
    %v52 = vld [vmem:[%s0] sm:$0xf]
    %v53 = vld [vmem:[#allocation2] sm:$0xff]
    %v54 = vld [vmem:[#allocation2 + $0x8] sm:$0xff]
    %v55 = vld [vmem:[#allocation2 + $0x10] sm:$0xff]
    %v56 = vld [vmem:[#allocation2 + $0x18] sm:$0xff]
    %v57 = vld [vmem:[%s2] sm:$0x1]
    %v59 = vlaneseq
    %v60 = vshrl.u32 %v59, 7
    %v61 = vsub.s32 0, %v60
    %v62 = vrot.slane %v57, %v61
    %vm64 = vcmask 261120
    %v66 = vsel %vm64, %v52, 0
    %68 = vmatprep.subr.mxu0 0.0
    %69 = vmatpush1.msra.mxu0 0.0
    %70 = vmatprep.subr.mxu0 0.0
    %71 = vmatpush1.msra.mxu0 0.0
    %72 = vmatprep.subr.mxu0 0.0
    %73 = vmatpush1.msra.mxu0 0.0
    %74 = vmatprep.subr.mxu0 0.0
    %75 = vmatpush1.msra.mxu0 0.0
    %76 = vmatprep.subr.mxu0 0.0
    %77 = vmatpush1.msra.mxu0 0.0
    %78 = vmatprep.subr.mxu0 0.0
    %79 = vmatpush1.msra.mxu0 0.0
    %80 = vmatprep.subr.mxu0 0.0
    %81 = vmatpush1.msra.mxu0 0.0
    %82 = vmatprep.subr.mxu0 0.0
    %83 = vmatpush1.msra.mxu0 0.0
    %84 = vmatprep.subr.mxu0 0.0
    %85 = vmatpush1.msra.mxu0 0.0
    %86 = vmatprep.subr.mxu0 0.0
    %87 = vmatpush1.msra.mxu0 0.0
    %88 = vmatprep.subr.mxu0 0.0
    %89 = vmatpush1.msra.mxu0 0.0
    %90 = vmatprep.subr.mxu0 0.0
    %91 = vmatpush1.msra.mxu0 0.0
    %92 = vmatprep.subr.mxu0 0.0
    %93 = vmatpush1.msra.mxu0 %v56
    %94 = vmatprep.subr.mxu0 0.0
    %95 = vmatpush1.msra.mxu0 %v55
    %96 = vmatprep.subr.mxu0 0.0
    %97 = vmatpush1.msra.mxu0 %v54
    %98 = vmatprep.subr.mxu0 0.0
    %99 = vmatpush1.msra.mxu0 %v53
    %100 = vmatprep.subr.mxu0 0.0
    %101 = vmatpush2.msra.mxu0 0.0
    %102 = vmatprep.subr.mxu0 0.0
    %103 = vmatpush2.msra.mxu0 0.0
    %104 = vmatprep.subr.mxu0 0.0
    %105 = vmatpush2.msra.mxu0 0.0
    %106 = vmatprep.subr.mxu0 0.0
    %107 = vmatpush2.msra.mxu0 0.0
    %108 = vmatprep.subr.mxu0 0.0
    %109 = vmatpush2.msra.mxu0 0.0
    %110 = vmatprep.subr.mxu0 0.0
    %111 = vmatpush2.msra.mxu0 0.0
    %112 = vmatprep.subr.mxu0 0.0
    %113 = vmatpush2.msra.mxu0 0.0
    %114 = vmatprep.subr.mxu0 0.0
    %115 = vmatpush2.msra.mxu0 0.0
    %116 = vmatprep.subr.mxu0 0.0
    %117 = vmatpush2.msra.mxu0 0.0
    %118 = vmatprep.subr.mxu0 0.0
    %119 = vmatpush2.msra.mxu0 0.0
    %120 = vmatprep.subr.mxu0 0.0
    %121 = vmatpush2.msra.mxu0 0.0
    %122 = vmatprep.subr.mxu0 0.0
    %123 = vmatpush2.msra.mxu0 0.0
    %124 = vmatprep.subr.mxu0 0.0
    %125 = vmatpush2.msra.mxu0 0.0
    %126 = vmatprep.subr.mxu0 0.0
    %127 = vmatpush2.msra.mxu0 0.0
    %128 = vmatprep.subr.mxu0 0.0
    %129 = vmatpush2.msra.mxu0 0.0
    %130 = vmatprep.subr.mxu0 0.0
    %131 = vmatpush2.msra.mxu0 0.0
    %132 = vmatprep.mubr.f32.mxu0 0.0
    %133 = vmatmul.mubr.f32.gmra.mxu0 %v66
    %v134 = vpop.f32.mrf.mxu0
    %v135 = vadd.f32 %v62, %v134
    %v136 = vpop.f32.mrf.mxu0
    %137 = vdwg.mxu0
    %v138 = vtanh.pop %v135
    %v139 = vld [vmem:[#allocation5] sm:$0xff]
    %v140 = vld [vmem:[#allocation5 + $0x8] sm:$0xff]
    %v141 = vld [vmem:[#allocation5 + $0x10] sm:$0xff]
    %v142 = vld [vmem:[#allocation5 + $0x18] sm:$0xff]
    %v143 = vld [vmem:[#allocation5 + $0x20] sm:$0xff]
    %v144 = vld [vmem:[#allocation5 + $0x28] sm:$0xff]
    %v145 = vld [vmem:[#allocation5 + $0x30] sm:$0xff]
    %v146 = vld [vmem:[#allocation5 + $0x38] sm:$0xff]
    %v147 = vld [vmem:[%s4] sm:$0x1]
    %v149 = vlaneseq
    %v150 = vshrl.u32 %v149, 7
    %v151 = vsub.s32 0, %v150
    %v152 = vrot.slane %v147, %v151
    %vm154 = vcmask 523264
    %v156 = vsel %vm154, %v138, 0
    %158 = vmatprep.subr.mxu0 0.0
    %159 = vmatpush1.msra.mxu0 0.0
    %160 = vmatprep.subr.mxu0 0.0
    %161 = vmatpush1.msra.mxu0 0.0
    %162 = vmatprep.subr.mxu0 0.0
    %163 = vmatpush1.msra.mxu0 0.0
    %164 = vmatprep.subr.mxu0 0.0
    %165 = vmatpush1.msra.mxu0 0.0
    %166 = vmatprep.subr.mxu0 0.0
    %167 = vmatpush1.msra.mxu0 0.0
    %168 = vmatprep.subr.mxu0 0.0
    %169 = vmatpush1.msra.mxu0 0.0
    %170 = vmatprep.subr.mxu0 0.0
    %171 = vmatpush1.msra.mxu0 0.0
    %172 = vmatprep.subr.mxu0 0.0
    %173 = vmatpush1.msra.mxu0 0.0
    %174 = vmatprep.subr.mxu0 0.0
    %175 = vmatpush1.msra.mxu0 %v146
    %176 = vmatprep.subr.mxu0 0.0
    %177 = vmatpush1.msra.mxu0 %v145
    %178 = vmatprep.subr.mxu0 0.0
    %179 = vmatpush1.msra.mxu0 %v144
    %180 = vmatprep.subr.mxu0 0.0
    %181 = vmatpush1.msra.mxu0 %v143
    %182 = vmatprep.subr.mxu0 0.0
    %183 = vmatpush1.msra.mxu0 %v142
    %184 = vmatprep.subr.mxu0 0.0
    %185 = vmatpush1.msra.mxu0 %v141
    %186 = vmatprep.subr.mxu0 0.0
    %187 = vmatpush1.msra.mxu0 %v140
    %188 = vmatprep.subr.mxu0 0.0
    %189 = vmatpush1.msra.mxu0 %v139
    %190 = vmatprep.subr.mxu0 0.0
    %191 = vmatpush2.msra.mxu0 0.0
    %192 = vmatprep.subr.mxu0 0.0
    %193 = vmatpush2.msra.mxu0 0.0
    %194 = vmatprep.subr.mxu0 0.0
    %195 = vmatpush2.msra.mxu0 0.0
    %196 = vmatprep.subr.mxu0 0.0
    %197 = vmatpush2.msra.mxu0 0.0
    %198 = vmatprep.subr.mxu0 0.0
    %199 = vmatpush2.msra.mxu0 0.0
    %200 = vmatprep.subr.mxu0 0.0
    %201 = vmatpush2.msra.mxu0 0.0
    %202 = vmatprep.subr.mxu0 0.0
    %203 = vmatpush2.msra.mxu0 0.0
    %204 = vmatprep.subr.mxu0 0.0
    %205 = vmatpush2.msra.mxu0 0.0
    %206 = vmatprep.subr.mxu0 0.0
    %207 = vmatpush2.msra.mxu0 0.0
    %208 = vmatprep.subr.mxu0 0.0
    %209 = vmatpush2.msra.mxu0 0.0
    %210 = vmatprep.subr.mxu0 0.0
    %211 = vmatpush2.msra.mxu0 0.0
    %212 = vmatprep.subr.mxu0 0.0
    %213 = vmatpush2.msra.mxu0 0.0
    %214 = vmatprep.subr.mxu0 0.0
    %215 = vmatpush2.msra.mxu0 0.0
    %216 = vmatprep.subr.mxu0 0.0
    %217 = vmatpush2.msra.mxu0 0.0
    %218 = vmatprep.subr.mxu0 0.0
    %219 = vmatpush2.msra.mxu0 0.0
    %220 = vmatprep.subr.mxu0 0.0
    %221 = vmatpush2.msra.mxu0 0.0
    %222 = vmatprep.mubr.f32.mxu0 0.0
    %223 = vmatmul.mubr.f32.gmra.mxu0 %v156
    %v224 = vpop.f32.mrf.mxu0
    %v225 = vadd.f32 %v152, %v224
    %v226 = vpop.f32.mrf.mxu0
    %227 = vdwg.mxu0
    %v228 = vtanh.pop %v225
    %vm229 = vcmask 257024
    %230 = vst.msk [vmem:[#allocation7] sm:$0xf] %vm229, %v228
    %232 = vrot.lane.b32.xlu0 %v228, 96
    %v233 = vpop.permute.xlu0 %232
    %235 = vst.msk [vmem:[#allocation8] sm:$0xf] %vm229, %v233
    // Predicated region
    $region30: #{_fused_forward.1} parent=1 // pred_check
      _
    $region31: #{_fused_forward.1} parent=1 // pred_check_branch
      %237 = sbr.rel (0) target = $region33
    $region32: #{_fused_forward.1} parent=1 // pred_region
      %s239 = ssub.s32 64, 64
      %240 = vsyncadd [#allocation4], %s239
      %s242 = sshll.u32 [#allocation7], 4
      %s243 = int_to_ptr.vmem [resolvable:$true] %s242
      %245 = dma.vmem_to_hbm [thread:$0]  %s243, 64, %s5, [#allocation4]
    $region33: #{_fused_forward.1} parent=1 // pred_fallthru
      _
    // Predicated region
    $region34: #{_fused_forward.1} parent=1 // pred_check
      _
    $region35: #{_fused_forward.1} parent=1 // pred_check_branch
      %247 = sbr.rel (0) target = $region37
    $region36: #{_fused_forward.1} parent=1 // pred_region
      %s249 = ssub.s32 64, 64
      %250 = vsyncadd [#allocation9], %s249
      %s252 = sshll.u32 [#allocation8], 4
      %s253 = int_to_ptr.vmem [resolvable:$true] %s252
      %255 = dma.vmem_to_hbm [thread:$0]  %s253, 64, %s6, [#allocation9]
    $region37: #{_fused_forward.1} parent=1 // pred_fallthru
      _
    // Predicated region
    $region38: #{_fused_forward.1} parent=1 // pred_check
      _
    $region39: #{_fused_forward.1} parent=1 // pred_check_branch
      %257 = sbr.rel (0) target = $region41
    $region40: #{_fused_forward.1} parent=1 // pred_region
      %258 = dma.done [#allocation4], 64
    $region41: #{_fused_forward.1} parent=1 // pred_fallthru
      _
    // Predicated region
    $region42: #{_fused_forward.1} parent=1 // pred_check
      _
    $region43: #{_fused_forward.1} parent=1 // pred_check_branch
      %260 = sbr.rel (0) target = $region45
    $region44: #{_fused_forward.1} parent=1 // pred_region
      %261 = dma.done [#allocation9], 64
    $region45: #{_fused_forward.1} parent=1 // pred_fallthru
      _
    %262 = vsyncpa [#allocation3], 1
    %263 = vsyncpa [#allocation6], 1
    %264 = vsyncpa [#allocation4], 1
    %265 = vsyncpa [#allocation9], 1

</llo_original>
